<compile_context>
chip_gen: v5e
topology: v5e:2x2
jax: 0.10.0
libtpu: 0.0.40
codegen_flags: <defaults>
</compile_context>

<pallas_src>
import jax
import jax.numpy as jnp
from jax.experimental import pallas as pl
from jax.experimental.pallas import tpu as pltpu


def _tile_compositor_kernel(w_ref, b_ref, x_ref, o_ref):
    # w_ref: (C,)          SMEM  -- 1x1 conv weight
    # b_ref: (1,)          SMEM  -- conv bias
    # x_ref: (S, Bt, C, T) VMEM  -- all slots, one batch tile, one spatial tile
    # o_ref: (Bt, C, T)    VMEM
    s, bt, c, t = x_ref.shape
    bias = b_ref[0].astype(jnp.float32)

    # ---- Attention logits per slot: 1x1 conv == per-pixel linear over channels.
    # Unrolled scalar*vector FMAs with weight/bias read from SMEM.
    x_slots = []
    logits = []
    for si in range(s):
        xs = x_ref[si].astype(jnp.float32)                  # (Bt, C, T)
        a = jnp.full((bt, t), bias, dtype=jnp.float32)      # (Bt, T)
        for ci in range(c):
            a = a + w_ref[ci].astype(jnp.float32) * xs[:, ci, :]
        x_slots.append(xs)
        logits.append(a)

    # ---- Softmax over the slot axis; normalization deferred to the end.
    m = logits[0]
    for si in range(1, s):
        m = jnp.maximum(m, logits[si])
    exps = [jnp.exp(a - m) for a in logits]                  # S x (Bt, T)
    denom = exps[0]
    for si in range(1, s):
        denom = denom + exps[si]
    # approx=False keeps results within the 1e-5 validation tolerance;
    # approx=True would move the divide onto the EUP slot in production builds.
    inv = pl.reciprocal(denom, approx=False)                 # (Bt, T)

    # ---- Slot-weighted sum with a single deferred normalization.
    acc = exps[0][:, None, :] * x_slots[0]                   # (Bt, C, T)
    for si in range(1, s):
        acc = acc + exps[si][:, None, :] * x_slots[si]
    o_ref[...] = (acc * inv[:, None, :]).astype(o_ref.dtype)


def _vmem_limit_bytes():
    """Scoped-VMEM limit sized from physical VMEM (v5e/v6e: 128 MiB, v7x: 64 MiB).
    Falls back to a v7x-safe value if the hardware query is unavailable."""
    try:
        cap = int(pltpu.get_tpu_info().vmem_capacity_bytes)
    except Exception:
        cap = 64 * 1024 * 1024
    return int(min((cap * 3) // 4, 96 * 1024 * 1024))


def _pick_tiles(s, b, c, hw, out_itemsize, block_budget_bytes):
    """Choose (batch_tile, hw_tile) so pipelined blocks plus in-kernel f32
    temporaries stay within `block_budget_bytes`."""

    def est_bytes(bt, t):
        in_blk_f32 = s * bt * c * t * 4       # f32 working copy & temporaries
        out_blk = bt * c * t * out_itemsize
        return 4 * in_blk_f32 + 2 * out_blk   # ~double-buffering + temps

    # Spatial (lane) tile: largest multiple of 128 dividing HW that fits the
    # budget; full extent if HW is not 128-aligned (always a legal BlockSpec).
    if hw % 128 != 0:
        hw_tile = hw
    else:
        hw_tile = 128
        t = 256
        while t <= hw:
            if hw % t == 0 and est_bytes(1, t) <= block_budget_bytes:
                hw_tile = t
            t += 128

    # Fold batch elements into one block only when the spatial axis is a single
    # tile (tiny working set): amortizes per-grid-step overhead; there is no
    # cross-batch reduction so this is always legal.
    bt = 1
    if hw // hw_tile == 1:
        for cand in range(b, 0, -1):
            if b % cand == 0 and est_bytes(cand, hw_tile) <= block_budget_bytes:
                bt = cand
                break
    return bt, hw_tile


def tile_compositor(x, weight, bias, num_slots):
    """x: (num_slots * B, C, H, W) NCHW (PyTorch convention).
    weight: (1, C, 1, 1) Conv2d weight; bias: (1,)."""
    sb, c, h, w_dim = x.shape
    assert sb % num_slots == 0
    s = num_slots
    b = sb // s
    hw = h * w_dim

    # Free, contiguous reshape only -- no transpose. The x BlockSpec below picks
    # out (all slots, one batch tile, all channels, one spatial tile) directly.
    xr = x.reshape(s, b, c, hw)
    wv = weight.reshape(c)        # (1, C, 1, 1) -> (C,)
    bv = bias.reshape(1)

    vmem_limit = _vmem_limit_bytes()
    bt, hw_tile = _pick_tiles(s, b, c, hw, x.dtype.itemsize,
                              block_budget_bytes=vmem_limit // 2)
    grid = (b // bt, hw // hw_tile)

    out = pl.pallas_call(
        _tile_compositor_kernel,
        out_shape=jax.ShapeDtypeStruct((b, c, hw), x.dtype),
        grid_spec=pltpu.PrefetchScalarGridSpec(
            num_scalar_prefetch=0,
            grid=grid,
            in_specs=[
                pl.BlockSpec(memory_space=pltpu.MemorySpace.SMEM),   # conv weight
                pl.BlockSpec(memory_space=pltpu.MemorySpace.SMEM),   # conv bias
                pl.BlockSpec((s, bt, c, hw_tile), lambda i, j: (0, i, 0, j)),
            ],
            out_specs=pl.BlockSpec((bt, c, hw_tile), lambda i, j: (i, 0, j)),
        ),
        compiler_params=pltpu.CompilerParams(
            dimension_semantics=("parallel", "parallel"),
            vmem_limit_bytes=vmem_limit,
        ),
    )(wv, bv, xr)

    return out.reshape(b, c, h, w_dim)


def tile_compositor_ref(x, weight, bias, num_slots):
    """Pure-JAX reference mirroring the PyTorch forward."""
    sb, c, h, w_dim = x.shape
    a = jnp.einsum('bchw,c->bhw', x, weight.reshape(-1)) + bias[0]
    a = a[:, None, :, :]
    s = num_slots
    b = sb // s
    xr = x.reshape(s, b, c, h, w_dim)
    ar = a.reshape(s, b, 1, h, w_dim)
    ar = jax.nn.softmax(ar, axis=0)
    return jnp.sum(ar * xr, axis=0)


if __name__ == "__main__":
    num_slots = 4
    batch = 2
    channels = 4
    h = w = 16

    key = jax.random.PRNGKey(0)
    kx, kw, kb = jax.random.split(key, 3)

    x = jax.random.normal(kx, (num_slots * batch, channels, h, w), dtype=jnp.float32)
    # Conv2d(channels, 1, kernel_size=1): weight (1, channels, 1, 1), bias (1,)
    conv_weight = jax.random.normal(kw, (1, channels, 1, 1), dtype=jnp.float32) * 0.1
    conv_bias = jax.random.normal(kb, (1,), dtype=jnp.float32) * 0.1

    out = tile_compositor(x, conv_weight, conv_bias, num_slots)
    out = jax.block_until_ready(out)

    ref = tile_compositor_ref(x, conv_weight, conv_bias, num_slots)
    assert out.shape == (batch, channels, h, w)
    assert jnp.allclose(out, ref, atol=1e-5, rtol=1e-5), "mismatch vs reference"

    print("KERNEL_OK")
</pallas_src>

<mosaic_0001>
module attributes {stable_mosaic.version = 11 : i64} {
  func.func @_tile_compositor_kernel(%arg0: i32, %arg1: i32, %arg2: memref<4xf32, #tpu.memory_space<smem>>, %arg3: memref<1xf32, #tpu.memory_space<smem>>, %arg4: memref<4x2x4x256xf32, #tpu.memory_space<vmem>>, %arg5: memref<2x4x256xf32, #tpu.memory_space<vmem>>) attributes {dimension_semantics = [#tpu.dimension_semantics<parallel>, #tpu.dimension_semantics<parallel>], iteration_bounds = array<i64: 1, 1>, scalar_prefetch = 0 : i64, scratch_operands = 0 : i64, tpu.core_type = #tpu.core_type<tc>, window_params = [{transform_indices = @transform_0, window_bounds = array<i64: 4>}, {transform_indices = @transform_1, window_bounds = array<i64: 1>}, {transform_indices = @transform_2, window_bounds = array<i64: 4, 2, 4, 256>}, {transform_indices = @transform_3, window_bounds = array<i64: 2, 4, 256>}]} {
    %c0 = arith.constant 0 : index
    %0 = memref.load %arg3[%c0] : memref<1xf32, #tpu.memory_space<smem>>
    %c0_0 = arith.constant 0 : index
    %c0_1 = arith.constant 0 : index
    %c0_2 = arith.constant 0 : index
    %c0_3 = arith.constant 0 : index
    %1 = vector.load %arg4[%c0_0, %c0_1, %c0_2, %c0_3] : memref<4x2x4x256xf32, #tpu.memory_space<vmem>>, vector<1x2x4x256xf32>
    %2 = vector.shape_cast %1 : vector<1x2x4x256xf32> to vector<2x4x256xf32>
    %3 = vector.broadcast %0 : f32 to vector<2x256xf32>
    %c0_4 = arith.constant 0 : index
    %4 = memref.load %arg2[%c0_4] : memref<4xf32, #tpu.memory_space<smem>>
    %5 = vector.extract_strided_slice %2 {offsets = [0, 0, 0], sizes = [2, 1, 256], strides = [1, 1, 1]} : vector<2x4x256xf32> to vector<2x1x256xf32>
    %6 = vector.shape_cast %5 : vector<2x1x256xf32> to vector<2x256xf32>
    %7 = vector.broadcast %4 : f32 to vector<2x256xf32>
    %8 = arith.mulf %7, %6 : vector<2x256xf32>
    %9 = arith.addf %3, %8 : vector<2x256xf32>
    %c1 = arith.constant 1 : index
    %10 = memref.load %arg2[%c1] : memref<4xf32, #tpu.memory_space<smem>>
    %11 = vector.extract_strided_slice %2 {offsets = [0, 1, 0], sizes = [2, 1, 256], strides = [1, 1, 1]} : vector<2x4x256xf32> to vector<2x1x256xf32>
    %12 = vector.shape_cast %11 : vector<2x1x256xf32> to vector<2x256xf32>
    %13 = vector.broadcast %10 : f32 to vector<2x256xf32>
    %14 = arith.mulf %13, %12 : vector<2x256xf32>
    %15 = arith.addf %9, %14 : vector<2x256xf32>
    %c2 = arith.constant 2 : index
    %16 = memref.load %arg2[%c2] : memref<4xf32, #tpu.memory_space<smem>>
    %17 = vector.extract_strided_slice %2 {offsets = [0, 2, 0], sizes = [2, 1, 256], strides = [1, 1, 1]} : vector<2x4x256xf32> to vector<2x1x256xf32>
    %18 = vector.shape_cast %17 : vector<2x1x256xf32> to vector<2x256xf32>
    %19 = vector.broadcast %16 : f32 to vector<2x256xf32>
    %20 = arith.mulf %19, %18 : vector<2x256xf32>
    %21 = arith.addf %15, %20 : vector<2x256xf32>
    %c3 = arith.constant 3 : index
    %22 = memref.load %arg2[%c3] : memref<4xf32, #tpu.memory_space<smem>>
    %23 = vector.extract_strided_slice %2 {offsets = [0, 3, 0], sizes = [2, 1, 256], strides = [1, 1, 1]} : vector<2x4x256xf32> to vector<2x1x256xf32>
    %24 = vector.shape_cast %23 : vector<2x1x256xf32> to vector<2x256xf32>
    %25 = vector.broadcast %22 : f32 to vector<2x256xf32>
    %26 = arith.mulf %25, %24 : vector<2x256xf32>
    %27 = arith.addf %21, %26 : vector<2x256xf32>
    %c1_5 = arith.constant 1 : index
    %c0_6 = arith.constant 0 : index
    %c0_7 = arith.constant 0 : index
    %c0_8 = arith.constant 0 : index
    %28 = vector.load %arg4[%c1_5, %c0_6, %c0_7, %c0_8] : memref<4x2x4x256xf32, #tpu.memory_space<vmem>>, vector<1x2x4x256xf32>
    %29 = vector.shape_cast %28 : vector<1x2x4x256xf32> to vector<2x4x256xf32>
    %30 = vector.broadcast %0 : f32 to vector<2x256xf32>
    %c0_9 = arith.constant 0 : index
    %31 = memref.load %arg2[%c0_9] : memref<4xf32, #tpu.memory_space<smem>>
    %32 = vector.extract_strided_slice %29 {offsets = [0, 0, 0], sizes = [2, 1, 256], strides = [1, 1, 1]} : vector<2x4x256xf32> to vector<2x1x256xf32>
    %33 = vector.shape_cast %32 : vector<2x1x256xf32> to vector<2x256xf32>
    %34 = vector.broadcast %31 : f32 to vector<2x256xf32>
    %35 = arith.mulf %34, %33 : vector<2x256xf32>
    %36 = arith.addf %30, %35 : vector<2x256xf32>
    %c1_10 = arith.constant 1 : index
    %37 = memref.load %arg2[%c1_10] : memref<4xf32, #tpu.memory_space<smem>>
    %38 = vector.extract_strided_slice %29 {offsets = [0, 1, 0], sizes = [2, 1, 256], strides = [1, 1, 1]} : vector<2x4x256xf32> to vector<2x1x256xf32>
    %39 = vector.shape_cast %38 : vector<2x1x256xf32> to vector<2x256xf32>
    %40 = vector.broadcast %37 : f32 to vector<2x256xf32>
    %41 = arith.mulf %40, %39 : vector<2x256xf32>
    %42 = arith.addf %36, %41 : vector<2x256xf32>
    %c2_11 = arith.constant 2 : index
    %43 = memref.load %arg2[%c2_11] : memref<4xf32, #tpu.memory_space<smem>>
    %44 = vector.extract_strided_slice %29 {offsets = [0, 2, 0], sizes = [2, 1, 256], strides = [1, 1, 1]} : vector<2x4x256xf32> to vector<2x1x256xf32>
    %45 = vector.shape_cast %44 : vector<2x1x256xf32> to vector<2x256xf32>
    %46 = vector.broadcast %43 : f32 to vector<2x256xf32>
    %47 = arith.mulf %46, %45 : vector<2x256xf32>
    %48 = arith.addf %42, %47 : vector<2x256xf32>
    %c3_12 = arith.constant 3 : index
    %49 = memref.load %arg2[%c3_12] : memref<4xf32, #tpu.memory_space<smem>>
    %50 = vector.extract_strided_slice %29 {offsets = [0, 3, 0], sizes = [2, 1, 256], strides = [1, 1, 1]} : vector<2x4x256xf32> to vector<2x1x256xf32>
    %51 = vector.shape_cast %50 : vector<2x1x256xf32> to vector<2x256xf32>
    %52 = vector.broadcast %49 : f32 to vector<2x256xf32>
    %53 = arith.mulf %52, %51 : vector<2x256xf32>
    %54 = arith.addf %48, %53 : vector<2x256xf32>
    %c2_13 = arith.constant 2 : index
    %c0_14 = arith.constant 0 : index
    %c0_15 = arith.constant 0 : index
    %c0_16 = arith.constant 0 : index
    %55 = vector.load %arg4[%c2_13, %c0_14, %c0_15, %c0_16] : memref<4x2x4x256xf32, #tpu.memory_space<vmem>>, vector<1x2x4x256xf32>
    %56 = vector.shape_cast %55 : vector<1x2x4x256xf32> to vector<2x4x256xf32>
    %57 = vector.broadcast %0 : f32 to vector<2x256xf32>
    %c0_17 = arith.constant 0 : index
    %58 = memref.load %arg2[%c0_17] : memref<4xf32, #tpu.memory_space<smem>>
    %59 = vector.extract_strided_slice %56 {offsets = [0, 0, 0], sizes = [2, 1, 256], strides = [1, 1, 1]} : vector<2x4x256xf32> to vector<2x1x256xf32>
    %60 = vector.shape_cast %59 : vector<2x1x256xf32> to vector<2x256xf32>
    %61 = vector.broadcast %58 : f32 to vector<2x256xf32>
    %62 = arith.mulf %61, %60 : vector<2x256xf32>
    %63 = arith.addf %57, %62 : vector<2x256xf32>
    %c1_18 = arith.constant 1 : index
    %64 = memref.load %arg2[%c1_18] : memref<4xf32, #tpu.memory_space<smem>>
    %65 = vector.extract_strided_slice %56 {offsets = [0, 1, 0], sizes = [2, 1, 256], strides = [1, 1, 1]} : vector<2x4x256xf32> to vector<2x1x256xf32>
    %66 = vector.shape_cast %65 : vector<2x1x256xf32> to vector<2x256xf32>
    %67 = vector.broadcast %64 : f32 to vector<2x256xf32>
    %68 = arith.mulf %67, %66 : vector<2x256xf32>
    %69 = arith.addf %63, %68 : vector<2x256xf32>
    %c2_19 = arith.constant 2 : index
    %70 = memref.load %arg2[%c2_19] : memref<4xf32, #tpu.memory_space<smem>>
    %71 = vector.extract_strided_slice %56 {offsets = [0, 2, 0], sizes = [2, 1, 256], strides = [1, 1, 1]} : vector<2x4x256xf32> to vector<2x1x256xf32>
    %72 = vector.shape_cast %71 : vector<2x1x256xf32> to vector<2x256xf32>
    %73 = vector.broadcast %70 : f32 to vector<2x256xf32>
    %74 = arith.mulf %73, %72 : vector<2x256xf32>
    %75 = arith.addf %69, %74 : vector<2x256xf32>
    %c3_20 = arith.constant 3 : index
    %76 = memref.load %arg2[%c3_20] : memref<4xf32, #tpu.memory_space<smem>>
    %77 = vector.extract_strided_slice %56 {offsets = [0, 3, 0], sizes = [2, 1, 256], strides = [1, 1, 1]} : vector<2x4x256xf32> to vector<2x1x256xf32>
    %78 = vector.shape_cast %77 : vector<2x1x256xf32> to vector<2x256xf32>
    %79 = vector.broadcast %76 : f32 to vector<2x256xf32>
    %80 = arith.mulf %79, %78 : vector<2x256xf32>
    %81 = arith.addf %75, %80 : vector<2x256xf32>
    %c3_21 = arith.constant 3 : index
    %c0_22 = arith.constant 0 : index
    %c0_23 = arith.constant 0 : index
    %c0_24 = arith.constant 0 : index
    %82 = vector.load %arg4[%c3_21, %c0_22, %c0_23, %c0_24] : memref<4x2x4x256xf32, #tpu.memory_space<vmem>>, vector<1x2x4x256xf32>
    %83 = vector.shape_cast %82 : vector<1x2x4x256xf32> to vector<2x4x256xf32>
    %84 = vector.broadcast %0 : f32 to vector<2x256xf32>
    %c0_25 = arith.constant 0 : index
    %85 = memref.load %arg2[%c0_25] : memref<4xf32, #tpu.memory_space<smem>>
    %86 = vector.extract_strided_slice %83 {offsets = [0, 0, 0], sizes = [2, 1, 256], strides = [1, 1, 1]} : vector<2x4x256xf32> to vector<2x1x256xf32>
    %87 = vector.shape_cast %86 : vector<2x1x256xf32> to vector<2x256xf32>
    %88 = vector.broadcast %85 : f32 to vector<2x256xf32>
    %89 = arith.mulf %88, %87 : vector<2x256xf32>
    %90 = arith.addf %84, %89 : vector<2x256xf32>
    %c1_26 = arith.constant 1 : index
    %91 = memref.load %arg2[%c1_26] : memref<4xf32, #tpu.memory_space<smem>>
    %92 = vector.extract_strided_slice %83 {offsets = [0, 1, 0], sizes = [2, 1, 256], strides = [1, 1, 1]} : vector<2x4x256xf32> to vector<2x1x256xf32>
    %93 = vector.shape_cast %92 : vector<2x1x256xf32> to vector<2x256xf32>
    %94 = vector.broadcast %91 : f32 to vector<2x256xf32>
    %95 = arith.mulf %94, %93 : vector<2x256xf32>
    %96 = arith.addf %90, %95 : vector<2x256xf32>
    %c2_27 = arith.constant 2 : index
    %97 = memref.load %arg2[%c2_27] : memref<4xf32, #tpu.memory_space<smem>>
    %98 = vector.extract_strided_slice %83 {offsets = [0, 2, 0], sizes = [2, 1, 256], strides = [1, 1, 1]} : vector<2x4x256xf32> to vector<2x1x256xf32>
    %99 = vector.shape_cast %98 : vector<2x1x256xf32> to vector<2x256xf32>
    %100 = vector.broadcast %97 : f32 to vector<2x256xf32>
    %101 = arith.mulf %100, %99 : vector<2x256xf32>
    %102 = arith.addf %96, %101 : vector<2x256xf32>
    %c3_28 = arith.constant 3 : index
    %103 = memref.load %arg2[%c3_28] : memref<4xf32, #tpu.memory_space<smem>>
    %104 = vector.extract_strided_slice %83 {offsets = [0, 3, 0], sizes = [2, 1, 256], strides = [1, 1, 1]} : vector<2x4x256xf32> to vector<2x1x256xf32>
    %105 = vector.shape_cast %104 : vector<2x1x256xf32> to vector<2x256xf32>
    %106 = vector.broadcast %103 : f32 to vector<2x256xf32>
    %107 = arith.mulf %106, %105 : vector<2x256xf32>
    %108 = arith.addf %102, %107 : vector<2x256xf32>
    %109 = arith.maximumf %27, %54 : vector<2x256xf32>
    %110 = arith.maximumf %109, %81 : vector<2x256xf32>
    %111 = arith.maximumf %110, %108 : vector<2x256xf32>
    %112 = arith.subf %27, %111 : vector<2x256xf32>
    %113 = math.exp %112 : vector<2x256xf32>
    %114 = arith.subf %54, %111 : vector<2x256xf32>
    %115 = math.exp %114 : vector<2x256xf32>
    %116 = arith.subf %81, %111 : vector<2x256xf32>
    %117 = math.exp %116 : vector<2x256xf32>
    %118 = arith.subf %108, %111 : vector<2x256xf32>
    %119 = math.exp %118 : vector<2x256xf32>
    %120 = arith.addf %113, %115 : vector<2x256xf32>
    %121 = arith.addf %120, %117 : vector<2x256xf32>
    %122 = arith.addf %121, %119 : vector<2x256xf32>
    %123 = tpu.reciprocal %122 : vector<2x256xf32> -> vector<2x256xf32>
    %124 = vector.shape_cast %113 : vector<2x256xf32> to vector<2x1x256xf32>
    %125 = vector.broadcast %124 : vector<2x1x256xf32> to vector<2x4x256xf32>
    %126 = arith.mulf %125, %2 : vector<2x4x256xf32>
    %127 = vector.shape_cast %115 : vector<2x256xf32> to vector<2x1x256xf32>
    %128 = vector.broadcast %127 : vector<2x1x256xf32> to vector<2x4x256xf32>
    %129 = arith.mulf %128, %29 : vector<2x4x256xf32>
    %130 = arith.addf %126, %129 : vector<2x4x256xf32>
    %131 = vector.shape_cast %117 : vector<2x256xf32> to vector<2x1x256xf32>
    %132 = vector.broadcast %131 : vector<2x1x256xf32> to vector<2x4x256xf32>
    %133 = arith.mulf %132, %56 : vector<2x4x256xf32>
    %134 = arith.addf %130, %133 : vector<2x4x256xf32>
    %135 = vector.shape_cast %119 : vector<2x256xf32> to vector<2x1x256xf32>
    %136 = vector.broadcast %135 : vector<2x1x256xf32> to vector<2x4x256xf32>
    %137 = arith.mulf %136, %83 : vector<2x4x256xf32>
    %138 = arith.addf %134, %137 : vector<2x4x256xf32>
    %139 = vector.shape_cast %123 : vector<2x256xf32> to vector<2x1x256xf32>
    %140 = vector.broadcast %139 : vector<2x1x256xf32> to vector<2x4x256xf32>
    %141 = arith.mulf %138, %140 : vector<2x4x256xf32>
    %c0_29 = arith.constant 0 : index
    %c0_30 = arith.constant 0 : index
    %c0_31 = arith.constant 0 : index
    %142 = vector.load %arg5[%c0_29, %c0_30, %c0_31] : memref<2x4x256xf32, #tpu.memory_space<vmem>>, vector<2x4x256xf32>
    tpu.vector_store %arg5[%c0_29, %c0_30, %c0_31], %141 {strides = array<i32>} : memref<2x4x256xf32, #tpu.memory_space<vmem>>, vector<2x4x256xf32>,
    return
  }
  func.func @transform_0(%arg0: i32, %arg1: i32) -> i32 {
    %c0_i32 = arith.constant 0 : i32
    %c0_i32_0 = arith.constant 0 : i32
    return %c0_i32 : i32
  }
  func.func @transform_1(%arg0: i32, %arg1: i32) -> i32 {
    %c0_i32 = arith.constant 0 : i32
    %c0_i32_0 = arith.constant 0 : i32
    return %c0_i32 : i32
  }
  func.func @transform_2(%arg0: i32, %arg1: i32) -> (i32, i32, i32, i32) {
    %c0_i32 = arith.constant 0 : i32
    %c0_i32_0 = arith.constant 0 : i32
    %c0_i32_1 = arith.constant 0 : i32
    return %c0_i32, %arg0, %c0_i32_0, %arg1 : i32, i32, i32, i32
  }
  func.func @transform_3(%arg0: i32, %arg1: i32) -> (i32, i32, i32) {
    %c0_i32 = arith.constant 0 : i32
    %c0_i32_0 = arith.constant 0 : i32
    return %arg0, %c0_i32, %arg1 : i32, i32, i32
  }
}

</mosaic_0001>

<llo_original>
// kernel: tpu_custom_call.1
$region0: #{tpu_custom_call.1}
  #allocation0 [shape = 'u32[]', space=smem, size = 0x4, offset = 0x4, fixed_abs, tag = 'smem constant byte address 0x4 - core index']
  #allocation1 [shape = 'u32[72,128]{1,0:T(1,128)}', space=vmem, size = 0x9000, scoped, tag = 'internal scratch']
  #allocation2 [shape = 'f32[1]{0:T(128)S(6)}', space=smem, size = 0x200, scoped, tag = 'scoped memory for tpu_custom_call.1']
  %s0 = inlined_call_operand.vmem [shape: f32[4], index: 0, kind: input, shape index: {}]
  %s1 = inlined_call_operand.<no memory space> [shape: f32[1], index: 1, kind: input, shape index: {}]
  %s2 = inlined_call_operand.hbm [shape: f32[4,2,4,256], index: 2, kind: input, shape index: {}]
  %s3 = inlined_call_operand.hbm [shape: f32[2,4,256], index: 3, kind: output, shape index: {}]
  %s4 = sld [smem:[#allocation0]]
  $region30: #{tpu_custom_call.1} parent=0
    _
  %s6 = ssub.s32 1, %s4
  %s7 = scalar_select 0, %s6, %s4
  %8 = sst [smem:[#allocation2]] %s1
  $region1: #{tpu_custom_call.1} parent=0
    #allocation3 [shape = 'u8[512]{0}', space=smem, size = 0x200, scoped, tag = 'input window, operand 0, single buffered']
    #allocation4 [shape = 's32[1]{0}', space=sflag, size = 0x4, scoped, tag = 'scoped memory for tpu_custom_call.1']
    #allocation5 [shape = 's32[1]{0}', space=sflag, size = 0x4, scoped, tag = 'scoped memory for tpu_custom_call.1']
    #allocation6 [shape = 's32[1]{0}', space=sflag, size = 0x4, scoped, tag = 'scoped memory for tpu_custom_call.1']
    #allocation7 [shape = 'u8[32768]{0}', space=vmem, size = 0x8000, scoped, tag = 'input window, operand 2, single buffered']
    #allocation8 [shape = 'u8[8192]{0}', space=vmem, size = 0x2000, scoped, tag = 'output window, operand 0, single buffered']
    %9 = vsyncpa [#allocation6], 0
    %10 = vsyncpa [#allocation4], 0
    %11 = vsyncpa [#allocation5], 0
    // Predicated region
    $region2: #{tpu_custom_call.1} parent=1 // pred_check
      _
    $region3: #{tpu_custom_call.1} parent=1 // pred_check_branch
      %13 = sbr.rel (0) target = $region5
    $region4: #{tpu_custom_call.1} parent=1 // pred_region
      %15 = vsyncadd [#allocation6], 0
      %s17 = sshll.u32 %s0, 4
      %s18 = int_to_ptr.vmem [resolvable:$true] %s17
      %20 = dma.vmem_to_smem %s18, 16, [#allocation3], [#allocation6]
    $region5: #{tpu_custom_call.1} parent=1 // pred_fallthru
      _
    // Predicated region
    $region6: #{tpu_custom_call.1} parent=1 // pred_check
      _
    $region7: #{tpu_custom_call.1} parent=1 // pred_check_branch
      %22 = sbr.rel (0) target = $region9
    $region8: #{tpu_custom_call.1} parent=1 // pred_region
      _
    $region9: #{tpu_custom_call.1} parent=1 // pred_fallthru
      _
    // Predicated region
    $region10: #{tpu_custom_call.1} parent=1 // pred_check
      _
    $region11: #{tpu_custom_call.1} parent=1 // pred_check_branch
      %24 = sbr.rel (0) target = $region13
    $region12: #{tpu_custom_call.1} parent=1 // pred_region
      %26 = vsyncadd [#allocation4], 0
      %s27 = sshll.u32 %s2, 4
      %s28 = int_to_ptr.hbm [resolvable:$true] %s27
      %s29 = sshll.u32 [#allocation7], 4
      %s30 = int_to_ptr.vmem [resolvable:$true] %s29
      %35 = dma.hbm_to_vmem [thread:$0]  %s28, 1024, %s30, [#allocation4], 128, 128, 8
    $region13: #{tpu_custom_call.1} parent=1 // pred_fallthru
      _
    // Predicated region
    $region14: #{tpu_custom_call.1} parent=1 // pred_check
      _
    $region15: #{tpu_custom_call.1} parent=1 // pred_check_branch
      %37 = sbr.rel (0) target = $region17
    $region16: #{tpu_custom_call.1} parent=1 // pred_region
      %39 = dma.done [#allocation6], 16
    $region17: #{tpu_custom_call.1} parent=1 // pred_fallthru
      _
    // Predicated region
    $region18: #{tpu_custom_call.1} parent=1 // pred_check
      _
    $region19: #{tpu_custom_call.1} parent=1 // pred_check_branch
      %41 = sbr.rel (0) target = $region21
    $region20: #{tpu_custom_call.1} parent=1 // pred_region
      %43 = dma.done [#allocation4], 1024
    $region21: #{tpu_custom_call.1} parent=1 // pred_fallthru
      _
    %44 = sfence
    %s45 = sld [smem:[#allocation2]]
    %v46 = vld [vmem:[#allocation7] sm:$0xff]
    %v47 = vld [vmem:[#allocation7 + $0x8] sm:$0xff]
    %v48 = vstv %s45
    %s49 = sld [smem:[#allocation3]]
    %v50 = vstv %s49
    %v51 = vmul.f32 %v50, %v46
    %v52 = vmul.f32 %v50, %v47
    %v53 = vadd.f32 %v48, %v51
    %v54 = vadd.f32 %v48, %v52
    %s55 = sld [smem:[#allocation3 + $0x1]]
    %v56 = vstv %s55
    %v57 = vmul.f32 %v56, %v46
    %v58 = vmul.f32 %v56, %v47
    %v61 = vrot.slane %v57, 5
    %v62 = vrot.slane %v61, 4
    %v63 = vrot.slane %v58, 5
    %v64 = vrot.slane %v63, 4
    %v67 = vadd.f32 %v53, %v62
    %v68 = vadd.f32 %v54, %v64
    %s69 = sld [smem:[#allocation3 + $0x2]]
    %v70 = vstv %s69
    %v71 = vmul.f32 %v70, %v46
    %v72 = vmul.f32 %v70, %v47
    %v75 = vrot.slane %v71, 6
    %v76 = vrot.slane %v75, 4
    %v77 = vrot.slane %v72, 6
    %v78 = vrot.slane %v77, 4
    %v81 = vadd.f32 %v67, %v76
    %v82 = vadd.f32 %v68, %v78
    %s83 = sld [smem:[#allocation3 + $0x3]]
    %v84 = vstv %s83
    %v85 = vmul.f32 %v84, %v46
    %v86 = vmul.f32 %v84, %v47
    %v89 = vrot.slane %v85, 7
    %v90 = vrot.slane %v89, 4
    %v91 = vrot.slane %v86, 7
    %v92 = vrot.slane %v91, 4
    %v95 = vadd.f32 %v81, %v90
    %v96 = vadd.f32 %v82, %v92
    %s97 = scalar_lea.vmem [#allocation7], 16
    %v98 = vld [vmem:[%s97] sm:$0xff]
    %v99 = vld [vmem:[%s97 + $0x8] sm:$0xff]
    %v100 = vmul.f32 %v50, %v98
    %v101 = vmul.f32 %v50, %v99
    %v102 = vadd.f32 %v48, %v100
    %v103 = vadd.f32 %v48, %v101
    %v104 = vmul.f32 %v56, %v98
    %v105 = vmul.f32 %v56, %v99
    %v108 = vrot.slane %v104, 5
    %v109 = vrot.slane %v108, 4
    %v110 = vrot.slane %v105, 5
    %v111 = vrot.slane %v110, 4
    %v114 = vadd.f32 %v102, %v109
    %v115 = vadd.f32 %v103, %v111
    %v116 = vmul.f32 %v70, %v98
    %v117 = vmul.f32 %v70, %v99
    %v120 = vrot.slane %v116, 6
    %v121 = vrot.slane %v120, 4
    %v122 = vrot.slane %v117, 6
    %v123 = vrot.slane %v122, 4
    %v126 = vadd.f32 %v114, %v121
    %v127 = vadd.f32 %v115, %v123
    %v128 = vmul.f32 %v84, %v98
    %v129 = vmul.f32 %v84, %v99
    %v132 = vrot.slane %v128, 7
    %v133 = vrot.slane %v132, 4
    %v134 = vrot.slane %v129, 7
    %v135 = vrot.slane %v134, 4
    %v138 = vadd.f32 %v126, %v133
    %v139 = vadd.f32 %v127, %v135
    %s140 = scalar_lea.vmem [#allocation7], 32
    %v141 = vld [vmem:[%s140] sm:$0xff]
    %v142 = vld [vmem:[%s140 + $0x8] sm:$0xff]
    %v143 = vmul.f32 %v50, %v141
    %v144 = vmul.f32 %v50, %v142
    %v145 = vadd.f32 %v48, %v143
    %v146 = vadd.f32 %v48, %v144
    %v147 = vmul.f32 %v56, %v141
    %v148 = vmul.f32 %v56, %v142
    %v151 = vrot.slane %v147, 5
    %v152 = vrot.slane %v151, 4
    %v153 = vrot.slane %v148, 5
    %v154 = vrot.slane %v153, 4
    %v157 = vadd.f32 %v145, %v152
    %v158 = vadd.f32 %v146, %v154
    %v159 = vmul.f32 %v70, %v141
    %v160 = vmul.f32 %v70, %v142
    %v163 = vrot.slane %v159, 6
    %v164 = vrot.slane %v163, 4
    %v165 = vrot.slane %v160, 6
    %v166 = vrot.slane %v165, 4
    %v169 = vadd.f32 %v157, %v164
    %v170 = vadd.f32 %v158, %v166
    %v171 = vmul.f32 %v84, %v141
    %v172 = vmul.f32 %v84, %v142
    %v175 = vrot.slane %v171, 7
    %v176 = vrot.slane %v175, 4
    %v177 = vrot.slane %v172, 7
    %v178 = vrot.slane %v177, 4
    %v181 = vadd.f32 %v169, %v176
    %v182 = vadd.f32 %v170, %v178
    %s183 = scalar_lea.vmem [#allocation7], 48
    %v184 = vld [vmem:[%s183] sm:$0xff]
    %v185 = vld [vmem:[%s183 + $0x8] sm:$0xff]
    %v186 = vmul.f32 %v50, %v184
    %v187 = vmul.f32 %v50, %v185
    %v188 = vadd.f32 %v48, %v186
    %v189 = vadd.f32 %v48, %v187
    %v190 = vmul.f32 %v56, %v184
    %v191 = vmul.f32 %v56, %v185
    %v194 = vrot.slane %v190, 5
    %v195 = vrot.slane %v194, 4
    %v196 = vrot.slane %v191, 5
    %v197 = vrot.slane %v196, 4
    %v200 = vadd.f32 %v188, %v195
    %v201 = vadd.f32 %v189, %v197
    %v202 = vmul.f32 %v70, %v184
    %v203 = vmul.f32 %v70, %v185
    %v206 = vrot.slane %v202, 6
    %v207 = vrot.slane %v206, 4
    %v208 = vrot.slane %v203, 6
    %v209 = vrot.slane %v208, 4
    %v212 = vadd.f32 %v200, %v207
    %v213 = vadd.f32 %v201, %v209
    %v214 = vmul.f32 %v84, %v184
    %v215 = vmul.f32 %v84, %v185
    %v218 = vrot.slane %v214, 7
    %v219 = vrot.slane %v218, 4
    %v220 = vrot.slane %v215, 7
    %v221 = vrot.slane %v220, 4
    %v224 = vadd.f32 %v212, %v219
    %v225 = vadd.f32 %v213, %v221
    %v226 = vmax.f32 %v95, %v138
    %v227 = vmax.f32 %v96, %v139
    %v228 = vmax.f32 %v226, %v181
    %v229 = vmax.f32 %v227, %v182
    %v230 = vmax.f32 %v228, %v224
    %v231 = vmax.f32 %v229, %v225
    %v232 = vsub.f32 %v95, %v230
    %v233 = vsub.f32 %v96, %v231
    %v234 = vmul.f32 %v232, 1.442695
    %v235 = vpow.pop %v234
    %v236 = vmul.f32 %v233, 1.442695
    %v237 = vpow.pop %v236
    %v238 = vsub.f32 %v138, %v230
    %v239 = vsub.f32 %v139, %v231
    %v240 = vmul.f32 %v238, 1.442695
    %v241 = vpow.pop %v240
    %v242 = vmul.f32 %v239, 1.442695
    %v243 = vpow.pop %v242
    %v244 = vsub.f32 %v181, %v230
    %v245 = vsub.f32 %v182, %v231
    %v246 = vmul.f32 %v244, 1.442695
    %v247 = vpow.pop %v246
    %v248 = vmul.f32 %v245, 1.442695
    %v249 = vpow.pop %v248
    %v250 = vsub.f32 %v224, %v230
    %v251 = vsub.f32 %v225, %v231
    %v252 = vmul.f32 %v250, 1.442695
    %v253 = vpow.pop %v252
    %v254 = vmul.f32 %v251, 1.442695
    %v255 = vpow.pop %v254
    %v256 = vadd.f32 %v235, %v241
    %v257 = vadd.f32 %v237, %v243
    %v258 = vadd.f32 %v256, %v247
    %v259 = vadd.f32 %v257, %v249
    %v260 = vadd.f32 %v258, %v253
    %v261 = vadd.f32 %v259, %v255
    %v262 = vrcp.pop %v260
    %v263 = vmul.f32 %v260, %v262
    %v264 = vsub.f32 1.0, %v263
    %v265 = vmul.f32 %v262, %v264
    %v266 = vadd.f32 %v262, %v265
    %vm267 = vweird.f32 %v260
    %vm268 = vweird.f32 %v262
    %vm269 = vmor %vm267, %vm268
    %v270 = vsel %vm269, %v262, %v266
    %v271 = vand.u32 2147483647, %v260
    %vm272 = vcmp.eq.f32.partialorder %v271, 8.507059e+37
    %v273 = vand.u32 %v260, 2147483648
    %v274 = vor.u32 1.1754944e-38, %v273
    %v275 = vsel %vm272, %v274, %v270
    %v276 = vrcp.pop %v261
    %v277 = vmul.f32 %v261, %v276
    %v278 = vsub.f32 1.0, %v277
    %v279 = vmul.f32 %v276, %v278
    %v280 = vadd.f32 %v276, %v279
    %vm281 = vweird.f32 %v261
    %vm282 = vweird.f32 %v276
    %vm283 = vmor %vm281, %vm282
    %v284 = vsel %vm283, %v276, %v280
    %v285 = vand.u32 2147483647, %v261
    %vm286 = vcmp.eq.f32.partialorder %v285, 8.507059e+37
    %v287 = vand.u32 %v261, 2147483648
    %v288 = vor.u32 1.1754944e-38, %v287
    %v289 = vsel %vm286, %v288, %v284
    %v292 = vperm.slane %v235, 0
    %v293 = vperm.slane %v235, 4
    %v294 = vperm.slane %v237, 0
    %v295 = vperm.slane %v237, 4
    %v300 = vperm.slane %v292, 0
    %v301 = vperm.slane %v293, 0
    %v302 = vperm.slane %v294, 0
    %v303 = vperm.slane %v295, 0
    %306 = vst [vmem:[#allocation1] ss:$2 sm:$0xff] %v46
    %v307 = vld.sshfl [vmem:[#allocation1] sm:$0xff pattern:$0x75316420]
    %v308 = vld.sshfl [vmem:[#allocation1 + $0x8] sm:$0xff pattern:$0x75316420]
    %s309 = scalar_lea.vmem [#allocation1], 16
    %310 = vst [vmem:[%s309] ss:$2 sm:$0xff] %v47
    %v311 = vld.sshfl [vmem:[#allocation1 + $0x10] sm:$0xff pattern:$0x75316420]
    %v312 = vld.sshfl [vmem:[#allocation1 + $0x18] sm:$0xff pattern:$0x75316420]
    %v317 = vmul.f32 %v300, %v307
    %v318 = vmul.f32 %v301, %v308
    %v319 = vmul.f32 %v302, %v311
    %v320 = vmul.f32 %v303, %v312
    %v323 = vperm.slane %v241, 0
    %v324 = vperm.slane %v241, 4
    %v325 = vperm.slane %v243, 0
    %v326 = vperm.slane %v243, 4
    %v331 = vperm.slane %v323, 0
    %v332 = vperm.slane %v324, 0
    %v333 = vperm.slane %v325, 0
    %v334 = vperm.slane %v326, 0
    %337 = vst [vmem:[#allocation1] ss:$2 sm:$0xff] %v98
    %v338 = vld.sshfl [vmem:[#allocation1] sm:$0xff pattern:$0x75316420]
    %v339 = vld.sshfl [vmem:[#allocation1 + $0x8] sm:$0xff pattern:$0x75316420]
    %s340 = scalar_lea.vmem [#allocation1], 16
    %341 = vst [vmem:[%s340] ss:$2 sm:$0xff] %v99
    %v342 = vld.sshfl [vmem:[#allocation1 + $0x10] sm:$0xff pattern:$0x75316420]
    %v343 = vld.sshfl [vmem:[#allocation1 + $0x18] sm:$0xff pattern:$0x75316420]
    %v348 = vmul.f32 %v331, %v338
    %v349 = vmul.f32 %v332, %v339
    %v350 = vmul.f32 %v333, %v342
    %v351 = vmul.f32 %v334, %v343
    %v352 = vadd.f32 %v317, %v348
    %v353 = vadd.f32 %v318, %v349
    %v354 = vadd.f32 %v319, %v350
    %v355 = vadd.f32 %v320, %v351
    %v358 = vperm.slane %v247, 0
    %v359 = vperm.slane %v247, 4
    %v360 = vperm.slane %v249, 0
    %v361 = vperm.slane %v249, 4
    %v366 = vperm.slane %v358, 0
    %v367 = vperm.slane %v359, 0
    %v368 = vperm.slane %v360, 0
    %v369 = vperm.slane %v361, 0
    %372 = vst [vmem:[#allocation1] ss:$2 sm:$0xff] %v141
    %v373 = vld.sshfl [vmem:[#allocation1] sm:$0xff pattern:$0x75316420]
    %v374 = vld.sshfl [vmem:[#allocation1 + $0x8] sm:$0xff pattern:$0x75316420]
    %s375 = scalar_lea.vmem [#allocation1], 16
    %376 = vst [vmem:[%s375] ss:$2 sm:$0xff] %v142
    %v377 = vld.sshfl [vmem:[#allocation1 + $0x10] sm:$0xff pattern:$0x75316420]
    %v378 = vld.sshfl [vmem:[#allocation1 + $0x18] sm:$0xff pattern:$0x75316420]
    %v383 = vmul.f32 %v366, %v373
    %v384 = vmul.f32 %v367, %v374
    %v385 = vmul.f32 %v368, %v377
    %v386 = vmul.f32 %v369, %v378
    %v387 = vadd.f32 %v352, %v383
    %v388 = vadd.f32 %v353, %v384
    %v389 = vadd.f32 %v354, %v385
    %v390 = vadd.f32 %v355, %v386
    %v393 = vperm.slane %v253, 0
    %v394 = vperm.slane %v253, 4
    %v395 = vperm.slane %v255, 0
    %v396 = vperm.slane %v255, 4
    %v401 = vperm.slane %v393, 0
    %v402 = vperm.slane %v394, 0
    %v403 = vperm.slane %v395, 0
    %v404 = vperm.slane %v396, 0
    %407 = vst [vmem:[#allocation1] ss:$2 sm:$0xff] %v184
    %v408 = vld.sshfl [vmem:[#allocation1] sm:$0xff pattern:$0x75316420]
    %v409 = vld.sshfl [vmem:[#allocation1 + $0x8] sm:$0xff pattern:$0x75316420]
    %s410 = scalar_lea.vmem [#allocation1], 16
    %411 = vst [vmem:[%s410] ss:$2 sm:$0xff] %v185
    %v412 = vld.sshfl [vmem:[#allocation1 + $0x10] sm:$0xff pattern:$0x75316420]
    %v413 = vld.sshfl [vmem:[#allocation1 + $0x18] sm:$0xff pattern:$0x75316420]
    %v418 = vmul.f32 %v401, %v408
    %v419 = vmul.f32 %v402, %v409
    %v420 = vmul.f32 %v403, %v412
    %v421 = vmul.f32 %v404, %v413
    %v422 = vadd.f32 %v387, %v418
    %v423 = vadd.f32 %v388, %v419
    %v424 = vadd.f32 %v389, %v420
    %v425 = vadd.f32 %v390, %v421
    %v428 = vperm.slane %v275, 0
    %v429 = vperm.slane %v275, 4
    %v430 = vperm.slane %v289, 0
    %v431 = vperm.slane %v289, 4
    %v436 = vperm.slane %v428, 0
    %v437 = vperm.slane %v429, 0
    %v438 = vperm.slane %v430, 0
    %v439 = vperm.slane %v431, 0
    %v440 = vmul.f32 %v422, %v436
    %v441 = vmul.f32 %v423, %v437
    %v442 = vmul.f32 %v424, %v438
    %v443 = vmul.f32 %v425, %v439
    %v448 = vrot.slane %v441, 4
    %v449 = vrot.slane %v443, 4
    %vm450 = vcmask 1043456
    %v451 = vsel %vm450, %v440, %v448
    %v452 = vsel %vm450, %v442, %v449
    %455 = vst [vmem:[#allocation8] sm:$0xff] %v451
    %456 = vst [vmem:[#allocation8 + $0x8] sm:$0xff] %v452
    // Predicated region
    $region22: #{tpu_custom_call.1} parent=1 // pred_check
      _
    $region23: #{tpu_custom_call.1} parent=1 // pred_check_branch
      %458 = sbr.rel (0) target = $region25
    $region24: #{tpu_custom_call.1} parent=1 // pred_region
      %460 = vsyncadd [#allocation5], 0
      %s461 = sshll.u32 [#allocation8], 4
      %s462 = int_to_ptr.vmem [resolvable:$true] %s461
      %s463 = sshll.u32 %s3, 4
      %s464 = int_to_ptr.hbm [resolvable:$true] %s463
      %469 = dma.vmem_to_hbm [thread:$0]  %s462, 256, %s464, [#allocation5], 128, 128, 8
    $region25: #{tpu_custom_call.1} parent=1 // pred_fallthru
      _
    // Predicated region
    $region26: #{tpu_custom_call.1} parent=1 // pred_check
      _
    $region27: #{tpu_custom_call.1} parent=1 // pred_check_branch
      %471 = sbr.rel (0) target = $region29
    $region28: #{tpu_custom_call.1} parent=1 // pred_region
      %473 = dma.done [#allocation5], 256
    $region29: #{tpu_custom_call.1} parent=1 // pred_fallthru
      _
    %474 = vsyncpa [#allocation4], 1
    %475 = vsyncpa [#allocation5], 1
    %476 = vsyncpa [#allocation6], 1

</llo_original>
